<compile_context>
chip_gen: v7x
topology: tpu7x:2x2x1
jax: 0.10.0
libtpu: 0.0.40
codegen_flags: <defaults>
</compile_context>

<pallas_src>
import functools

import jax
import jax.numpy as jnp
from jax import lax
from jax.experimental import pallas as pl
from jax.experimental.pallas import tpu as pltpu


def _round_up(x, m):
    return ((x + m - 1) // m) * m


def _pick_tile(dim, candidates=(512, 256, 128)):
    """Largest MXU-friendly tile that divides `dim`, else the full dim."""
    for c in candidates:
        if dim >= c and dim % c == 0:
            return c
    return dim


def _featurenet_kernel(x_ref, w_ref, o_ref, acc_ref, *, nonlinearity):
    # x_ref: (tb, tk), w_ref: (tn, tk) [PyTorch layout], o_ref: (tb, tn),
    # acc_ref: (tb, tn) f32 scratch (resident across the K grid axis).
    k = pl.program_id(2)

    @pl.when(k == 0)
    def _init():
        acc_ref[...] = jnp.zeros_like(acc_ref)

    # x[tb,tk] @ w[tn,tk]^T on the MXU with f32 accumulation.
    acc_ref[...] += lax.dot_general(
        x_ref[...], w_ref[...],
        dimension_numbers=(((1,), (1,)), ((), ())),
        preferred_element_type=jnp.float32,
    )

    @pl.when(k == pl.num_programs(2) - 1)
    def _finalize():
        acc = acc_ref[...]
        if nonlinearity == "tanh":
            acc = jnp.tanh(acc)
        elif nonlinearity == "relu":
            acc = jnp.maximum(acc, 0.0)
        elif nonlinearity == "sigmoid":
            acc = jax.nn.sigmoid(acc)
        # "linear": identity
        o_ref[...] = acc.astype(o_ref.dtype)


def featurenet_forward(features, weight, *, nonlinearity="tanh", tb=None,
                       out_dtype=None, compute_dtype=None):
    """FeatureNet forward: nonlinearity(features @ weight.T), bias=False.

    features: [B, input_dim]
    weight:   [output_dim, input_dim]   (PyTorch nn.Linear layout, unmodified)
    returns:  [B, output_dim]
    """
    if nonlinearity not in ("tanh", "relu", "sigmoid", "linear"):
        raise ValueError("nonlinearity must be one of (tanh, relu, sigmoid, linear)")

    B, K = features.shape
    N, K_w = weight.shape
    assert K == K_w, "weight / feature input_dim mismatch"
    out_dtype = out_dtype or features.dtype

    if compute_dtype is not None:
        features = features.astype(compute_dtype)
        weight = weight.astype(compute_dtype)

    in_dtype = features.dtype
    sublane = 16 if in_dtype == jnp.bfloat16 else 8

    # Tile selection: full dims when they don't divide a lane/MXU granule
    # (legal for BlockSpec), MXU-sized granules when they do.
    tk = _pick_tile(K)
    tn = _pick_tile(N)
    if tb is None:
        tb = min(_round_up(B, sublane), 1024)
    tb = max(_round_up(tb, sublane), sublane)

    # Only the batch axis may need rounding (cheap; K is streamed unpadded).
    Bp = _round_up(B, tb)
    x = features
    if Bp != B:
        x = jnp.zeros((Bp, K), in_dtype).at[:B, :].set(features)

    grid = (Bp // tb, N // tn, K // tk)
    w_resident = (grid[1] == 1 and grid[2] == 1)  # constant weight block index

    x_spec = pl.BlockSpec((tb, tk), lambda i, j, k: (i, k))
    if w_resident:
        w_spec = pl.BlockSpec((tn, tk), lambda i, j, k: (j, k),
                              pipeline_mode=pl.Buffered(1))
    else:
        w_spec = pl.BlockSpec((tn, tk), lambda i, j, k: (j, k))
    o_spec = pl.BlockSpec((tb, tn), lambda i, j, k: (i, j))

    # VMEM budget derived from the real tile footprint (cap: v7x physical 64 MiB).
    in_sz = jnp.dtype(in_dtype).itemsize
    out_sz = jnp.dtype(out_dtype).itemsize
    w_bufs = 1 if w_resident else 2
    need = (2 * tb * tk * in_sz            # double-buffered activation tile
            + w_bufs * tn * tk * in_sz     # weight tile
            + 2 * tb * tn * out_sz         # double-buffered output tile
            + tb * tn * 4)                 # f32 accumulator scratch
    vmem_limit = int(min(max(2 * need, 32 * 1024 * 1024), 64 * 1024 * 1024))

    # Cost estimate from the TRUE problem size (not padded dims).
    cost = pl.CostEstimate(
        flops=2 * B * K * N,
        transcendentals=B * N if nonlinearity in ("tanh", "sigmoid") else 0,
        bytes_accessed=B * K * in_sz + N * K * in_sz + B * N * out_sz,
    )

    out_p = pl.pallas_call(
        functools.partial(_featurenet_kernel, nonlinearity=nonlinearity),
        out_shape=jax.ShapeDtypeStruct((Bp, N), out_dtype),
        grid_spec=pltpu.PrefetchScalarGridSpec(
            num_scalar_prefetch=0,
            grid=grid,
            in_specs=[x_spec, w_spec],
            out_specs=o_spec,
            scratch_shapes=[pltpu.VMEM((tb, tn), jnp.float32)],
        ),
        compiler_params=pltpu.CompilerParams(
            dimension_semantics=("parallel", "parallel", "arbitrary"),
            vmem_limit_bytes=vmem_limit,
        ),
        cost_estimate=cost,
    )(x, weight)

    return out_p[:B, :] if Bp != B else out_p


if __name__ == "__main__":
    # Shapes implied by the module: FeatureNet(input_dim=32, output_dim=16), batch=8.
    B, input_dim, output_dim = 8, 32, 16

    key = jax.random.PRNGKey(0)
    k_x, k_w = jax.random.split(key)

    features = jax.random.normal(k_x, (B, input_dim), dtype=jnp.float32)

    # nn.Linear default init: uniform(-1/sqrt(in), 1/sqrt(in)), bias=False.
    bound = 1.0 / (input_dim ** 0.5)
    weight = jax.random.uniform(
        k_w, (output_dim, input_dim), dtype=jnp.float32, minval=-bound, maxval=bound
    )  # PyTorch layout: [output_dim, input_dim]

    out = featurenet_forward(features, weight, nonlinearity="tanh")
    out = jax.block_until_ready(out)

    # Reference: tanh(x @ W^T)  (matches FeatureNet.forward with tanh, bias=False).
    ref = jnp.tanh(features @ weight.T)
    assert out.shape == (B, output_dim)
    assert jnp.allclose(out, ref, atol=1e-5, rtol=1e-5), "mismatch vs reference (tanh)"

    # Other supported nonlinearities (cheap, same shapes).
    for nl, fn in (("relu", jax.nn.relu), ("sigmoid", jax.nn.sigmoid),
                   ("linear", lambda x: x)):
        o = jax.block_until_ready(featurenet_forward(features, weight, nonlinearity=nl))
        assert jnp.allclose(o, fn(features @ weight.T), atol=1e-5, rtol=1e-5), nl

    # bf16 compute path (v6e/v7x perf option) -- looser tolerance vs f32 reference.
    o_bf16 = jax.block_until_ready(
        featurenet_forward(features, weight, nonlinearity="tanh",
                           compute_dtype=jnp.bfloat16, out_dtype=jnp.float32))
    assert jnp.allclose(o_bf16, ref, atol=5e-2), "mismatch vs reference (bf16 path)"

    print("KERNEL_OK")
</pallas_src>

<mosaic_0001>
module attributes {stable_mosaic.version = 11 : i64} {
  func.func @_featurenet_kernel(%arg0: i32, %arg1: i32, %arg2: i32, %arg3: memref<8x32xf32, #tpu.memory_space<vmem>>, %arg4: memref<16x32xf32, #tpu.memory_space<vmem>>, %arg5: memref<8x16xf32, #tpu.memory_space<vmem>>, %arg6: memref<8x16xf32, #tpu.memory_space<vmem>>) attributes {dimension_semantics = [#tpu.dimension_semantics<parallel>, #tpu.dimension_semantics<parallel>, #tpu.dimension_semantics<arbitrary>], iteration_bounds = array<i64: 1, 1, 1>, scalar_prefetch = 0 : i64, scratch_operands = 1 : i64, tpu.core_type = #tpu.core_type<tc>, window_params = [{transform_indices = @transform_0, window_bounds = array<i64: 8, 32>}, {pipeline_mode = #tpu.pipeline_mode<synchronous>, transform_indices = @transform_1, window_bounds = array<i64: 16, 32>}, {transform_indices = @transform_2, window_bounds = array<i64: 8, 16>}]} {
    %c0_i32 = arith.constant 0 : i32
    %0 = arith.cmpi eq, %arg2, %c0_i32 : i32
    %1 = arith.extui %0 : i1 to i32
    %c0_i32_0 = arith.constant 0 : i32
    %2 = arith.cmpi ne, %1, %c0_i32_0 : i32
    scf.if %2 {
      %cst_10 = arith.constant 0.000000e+00 : f32
      %12 = vector.broadcast %cst_10 : f32 to vector<8x16xf32>
      %c0_11 = arith.constant 0 : index
      %c0_12 = arith.constant 0 : index
      %13 = vector.load %arg6[%c0_11, %c0_12] : memref<8x16xf32, #tpu.memory_space<vmem>>, vector<8x16xf32>
      tpu.vector_store %arg6[%c0_11, %c0_12], %12 {strides = array<i32>} : memref<8x16xf32, #tpu.memory_space<vmem>>, vector<8x16xf32>,
    } else {
    }
    %c0 = arith.constant 0 : index
    %c0_1 = arith.constant 0 : index
    %3 = vector.load %arg6[%c0, %c0_1] : memref<8x16xf32, #tpu.memory_space<vmem>>, vector<8x16xf32>
    %c0_2 = arith.constant 0 : index
    %c0_3 = arith.constant 0 : index
    %4 = vector.load %arg3[%c0_2, %c0_3] : memref<8x32xf32, #tpu.memory_space<vmem>>, vector<8x32xf32>
    %c0_4 = arith.constant 0 : index
    %c0_5 = arith.constant 0 : index
    %5 = vector.load %arg4[%c0_4, %c0_5] : memref<16x32xf32, #tpu.memory_space<vmem>>, vector<16x32xf32>
    %cst = arith.constant dense<0.000000e+00> : vector<8x16xf32>
    %6 = tpu.matmul %4, %5, %cst {dimension_numbers = #tpu.dot_dimension_numbers<[1], [1], [0], [0], [0, 0, 1, 0], [], []>} : vector<8x32xf32>, vector<16x32xf32>, vector<8x16xf32> -> vector<8x16xf32>
    %7 = arith.addf %3, %6 : vector<8x16xf32>
    %c0_6 = arith.constant 0 : index
    %c0_7 = arith.constant 0 : index
    %8 = vector.load %arg6[%c0_6, %c0_7] : memref<8x16xf32, #tpu.memory_space<vmem>>, vector<8x16xf32>
    tpu.vector_store %arg6[%c0_6, %c0_7], %7 {strides = array<i32>} : memref<8x16xf32, #tpu.memory_space<vmem>>, vector<8x16xf32>,
    %c0_i32_8 = arith.constant 0 : i32
    %9 = arith.cmpi eq, %arg2, %c0_i32_8 : i32
    %10 = arith.extui %9 : i1 to i32
    %c0_i32_9 = arith.constant 0 : i32
    %11 = arith.cmpi ne, %10, %c0_i32_9 : i32
    scf.if %11 {
      %c0_10 = arith.constant 0 : index
      %c0_11 = arith.constant 0 : index
      %12 = vector.load %arg6[%c0_10, %c0_11] : memref<8x16xf32, #tpu.memory_space<vmem>>, vector<8x16xf32>
      %13 = math.tanh %12 : vector<8x16xf32>
      %c0_12 = arith.constant 0 : index
      %c0_13 = arith.constant 0 : index
      %14 = vector.load %arg5[%c0_12, %c0_13] : memref<8x16xf32, #tpu.memory_space<vmem>>, vector<8x16xf32>
      tpu.vector_store %arg5[%c0_12, %c0_13], %13 {strides = array<i32>} : memref<8x16xf32, #tpu.memory_space<vmem>>, vector<8x16xf32>,
    } else {
    }
    return
  }
  func.func @transform_0(%arg0: i32, %arg1: i32, %arg2: i32) -> (i32, i32) {
    %c0_i32 = arith.constant 0 : i32
    return %arg0, %arg2 : i32, i32
  }
  func.func @transform_1(%arg0: i32, %arg1: i32, %arg2: i32) -> (i32, i32) {
    %c0_i32 = arith.constant 0 : i32
    return %arg1, %arg2 : i32, i32
  }
  func.func @transform_2(%arg0: i32, %arg1: i32, %arg2: i32) -> (i32, i32) {
    %c0_i32 = arith.constant 0 : i32
    return %arg0, %arg1 : i32, i32
  }
}

</mosaic_0001>

<llo_original>
// kernel: tpu_custom_call.1
$region0: #{tpu_custom_call.1}
  #allocation0 [shape = 'u32[]', space=smem, size = 0x4, offset = 0x4, fixed_abs, tag = 'smem constant byte address 0x4 - core index']
  #allocation1 [shape = 'u32[144,128]{1,0:T(1,128)}', space=vmem, size = 0x12000, scoped, tag = 'internal scratch']
  #allocation2 [shape = 'f32[8,16]{1,0:T(8,128)}', space=vmem, size = 0x1000, scoped, tag = 'scratch operand']
  %s0 = inlined_call_operand.hbm [shape: f32[8,32], index: 0, kind: input, shape index: {}]
  %s1 = inlined_call_operand.hbm [shape: f32[16,32], index: 1, kind: input, shape index: {}]
  %s2 = inlined_call_operand.hbm [shape: f32[8,16], index: 2, kind: output, shape index: {}]
  %s3 = sld [smem:[#allocation0]]
  $region34: #{tpu_custom_call.1} parent=0
    _
  %s5 = ssub.s32 1, %s3
  %s6 = scalar_select 0, %s5, %s3
  $region1: #{tpu_custom_call.1} parent=0
    #allocation3 [shape = 'u8[4096]{0}', space=vmem, size = 0x1000, scoped, tag = 'input window, operand 0, single buffered']
    #allocation4 [shape = 's32[1]{0}', space=sflag, size = 0x4, scoped, tag = 'scoped memory for tpu_custom_call.1']
    #allocation5 [shape = 's32[1]{0}', space=sflag, size = 0x4, scoped, tag = 'scoped memory for tpu_custom_call.1']
    #allocation6 [shape = 'u8[8192]{0}', space=vmem, size = 0x2000, scoped, tag = 'input window, operand 1, single buffered']
    #allocation7 [shape = 's32[1]{0}', space=sflag, size = 0x4, scoped, tag = 'scoped memory for tpu_custom_call.1']
    #allocation8 [shape = 'u8[4096]{0}', space=vmem, size = 0x1000, scoped, tag = 'output window, operand 0, single buffered']
    %7 = vsyncpa [#allocation4], 0
    %8 = vsyncpa [#allocation7], 0
    %9 = vsyncpa [#allocation5], 0
    // Predicated region
    $region2: #{tpu_custom_call.1} parent=1 // pred_check
      _
    $region3: #{tpu_custom_call.1} parent=1 // pred_check_branch
      %11 = sbr.rel (0) target = $region5
    $region4: #{tpu_custom_call.1} parent=1 // pred_region
      %s13 = ssub.s32 128, 128
      %14 = vsyncadd [#allocation4], %s13
      %s16 = sshll.u32 [#allocation3], 4
      %s17 = int_to_ptr.vmem [resolvable:$true] %s16
      %19 = dma.hbm_to_vmem [thread:$0]  %s0, 128, %s17, [#allocation4]
    $region5: #{tpu_custom_call.1} parent=1 // pred_fallthru
      _
    // Predicated region
    $region6: #{tpu_custom_call.1} parent=1 // pred_check
      _
    $region7: #{tpu_custom_call.1} parent=1 // pred_check_branch
      %21 = sbr.rel (0) target = $region9
    $region8: #{tpu_custom_call.1} parent=1 // pred_region
      %s23 = ssub.s32 256, 256
      %24 = vsyncadd [#allocation7], %s23
      %s25 = sshll.u32 [#allocation6], 4
      %s26 = int_to_ptr.vmem [resolvable:$true] %s25
      %31 = dma.hbm_to_vmem [thread:$0]  %s1, 256, %s26, [#allocation7], 128, 128, 8
    $region9: #{tpu_custom_call.1} parent=1 // pred_fallthru
      _
    // Predicated region
    $region10: #{tpu_custom_call.1} parent=1 // pred_check
      _
    $region11: #{tpu_custom_call.1} parent=1 // pred_check_branch
      %33 = sbr.rel (0) target = $region13
    $region12: #{tpu_custom_call.1} parent=1 // pred_region
      %34 = dma.done [#allocation4], 128
    $region13: #{tpu_custom_call.1} parent=1 // pred_fallthru
      _
    // Predicated region
    $region14: #{tpu_custom_call.1} parent=1 // pred_check
      _
    $region15: #{tpu_custom_call.1} parent=1 // pred_check_branch
      %36 = sbr.rel (0) target = $region17
    $region16: #{tpu_custom_call.1} parent=1 // pred_region
      %37 = dma.done [#allocation7], 256
    $region17: #{tpu_custom_call.1} parent=1 // pred_fallthru
      _
    %p38 = scmp.eq.s32.totalorder 0, 0
    // Predicated region
    $region18: #{tpu_custom_call.1} parent=1 // pred_check
      %p39 = pneg %p38
    $region19: #{tpu_custom_call.1} parent=1 // pred_check_branch
      %41 = sbr.rel (%p39) target = $region21
    $region20: #{tpu_custom_call.1} parent=1 // pred_region
      %vm42 = vcmask 130048
      %43 = vst.msk [vmem:[#allocation2] sm:$0xff] %vm42, 0.0
    $region21: #{tpu_custom_call.1} parent=1 // pred_fallthru
      _
    %v44 = vld [vmem:[#allocation2] sm:$0xff]
    %v45 = vld [vmem:[#allocation3] sm:$0xff]
    %v46 = vld [vmem:[#allocation6] sm:$0xff]
    %v47 = vld [vmem:[#allocation6 + $0x8] sm:$0xff]
    %vm48 = vcmask 261120
    %v50 = vsel %vm48, %v45, 0
    %v53 = vsel %vm48, %v46, 0
    %v56 = vsel %vm48, %v47, 0
    %58 = vmatprep.subr.mxu0 0.0
    %59 = vmatpush1.xpose.msra.mxu0 %v53
    %60 = vmatprep.subr.mxu0 0.0
    %61 = vmatpush1.xpose.msra.mxu0 %v56
    %62 = vmatprep.subr.mxu0 0.0
    %63 = vmatpush1.xpose.msra.mxu0 0.0
    %64 = vmatprep.subr.mxu0 0.0
    %65 = vmatpush1.xpose.msra.mxu0 0.0
    %66 = vmatprep.subr.mxu0 0.0
    %67 = vmatpush1.xpose.msra.mxu0 0.0
    %68 = vmatprep.subr.mxu0 0.0
    %69 = vmatpush1.xpose.msra.mxu0 0.0
    %70 = vmatprep.subr.mxu0 0.0
    %71 = vmatpush1.xpose.msra.mxu0 0.0
    %72 = vmatprep.subr.mxu0 0.0
    %73 = vmatpush1.xpose.msra.mxu0 0.0
    %74 = vmatprep.subr.mxu0 0.0
    %75 = vmatpush1.xpose.msra.mxu0 0.0
    %76 = vmatprep.subr.mxu0 0.0
    %77 = vmatpush1.xpose.msra.mxu0 0.0
    %78 = vmatprep.subr.mxu0 0.0
    %79 = vmatpush1.xpose.msra.mxu0 0.0
    %80 = vmatprep.subr.mxu0 0.0
    %81 = vmatpush1.xpose.msra.mxu0 0.0
    %82 = vmatprep.subr.mxu0 0.0
    %83 = vmatpush1.xpose.msra.mxu0 0.0
    %84 = vmatprep.subr.mxu0 0.0
    %85 = vmatpush1.xpose.msra.mxu0 0.0
    %86 = vmatprep.subr.mxu0 0.0
    %87 = vmatpush1.xpose.msra.mxu0 0.0
    %88 = vmatprep.subr.mxu0 0.0
    %89 = vmatpush1.xpose.msra.mxu0 0.0
    %90 = vmatprep.subr.mxu0 0.0
    %91 = vmatpush1.xpose.msra.mxu0 0.0
    %92 = vmatprep.subr.mxu0 0.0
    %93 = vmatpush1.xpose.msra.mxu0 0.0
    %94 = vmatprep.subr.mxu0 0.0
    %95 = vmatpush1.xpose.msra.mxu0 0.0
    %96 = vmatprep.subr.mxu0 0.0
    %97 = vmatpush1.xpose.msra.mxu0 0.0
    %98 = vmatprep.subr.mxu0 0.0
    %99 = vmatpush1.xpose.msra.mxu0 0.0
    %100 = vmatprep.subr.mxu0 0.0
    %101 = vmatpush1.xpose.msra.mxu0 0.0
    %102 = vmatprep.subr.mxu0 0.0
    %103 = vmatpush1.xpose.msra.mxu0 0.0
    %104 = vmatprep.subr.mxu0 0.0
    %105 = vmatpush1.xpose.msra.mxu0 0.0
    %106 = vmatprep.subr.mxu0 0.0
    %107 = vmatpush1.xpose.msra.mxu0 0.0
    %108 = vmatprep.subr.mxu0 0.0
    %109 = vmatpush1.xpose.msra.mxu0 0.0
    %110 = vmatprep.subr.mxu0 0.0
    %111 = vmatpush1.xpose.msra.mxu0 0.0
    %112 = vmatprep.subr.mxu0 0.0
    %113 = vmatpush1.xpose.msra.mxu0 0.0
    %114 = vmatprep.subr.mxu0 0.0
    %115 = vmatpush1.xpose.msra.mxu0 0.0
    %116 = vmatprep.subr.mxu0 0.0
    %117 = vmatpush1.xpose.msra.mxu0 0.0
    %118 = vmatprep.subr.mxu0 0.0
    %119 = vmatpush1.xpose.msra.mxu0 0.0
    %120 = vmatprep.subr.mxu0 0.0
    %121 = vmatpush1.xpose.msra.mxu0 0.0
    %122 = vmatprep.mubr.f32.mxu0 0.0
    %123 = vmatmul.mubr.f32.gmra.mrb[0].mxu0 %v50
    %v124 = vpop.f32.mrb[0].mxu0
    %v125 = vadd.f32 0.0, %v124
    %v126 = vpop.f32.mrb[0].mxu0
    %127 = vdwg.mxu0
    %v128 = vadd.f32 %v44, %v125
    %vm129 = vcmask 130048
    %130 = vst.msk [vmem:[#allocation2] sm:$0xff] %vm129, %v128
    // Predicated region
    $region22: #{tpu_custom_call.1} parent=1 // pred_check
      %p131 = pneg %p38
    $region23: #{tpu_custom_call.1} parent=1 // pred_check_branch
      %133 = sbr.rel (%p131) target = $region25
    $region24: #{tpu_custom_call.1} parent=1 // pred_region
      %v134 = vld [vmem:[#allocation2] sm:$0xff]
      %v135 = vtanh.pop %v134
      %136 = vst.msk [vmem:[#allocation8] sm:$0xff] %vm129, %v135
    $region25: #{tpu_custom_call.1} parent=1 // pred_fallthru
      _
    // Predicated region
    $region26: #{tpu_custom_call.1} parent=1 // pred_check
      _
    $region27: #{tpu_custom_call.1} parent=1 // pred_check_branch
      %138 = sbr.rel (0) target = $region29
    $region28: #{tpu_custom_call.1} parent=1 // pred_region
      %s140 = ssub.s32 128, 128
      %141 = vsyncadd [#allocation5], %s140
      %s143 = sshll.u32 [#allocation8], 4
      %s144 = int_to_ptr.vmem [resolvable:$true] %s143
      %146 = dma.vmem_to_hbm [thread:$0]  %s144, 128, %s2, [#allocation5]
    $region29: #{tpu_custom_call.1} parent=1 // pred_fallthru
      _
    // Predicated region
    $region30: #{tpu_custom_call.1} parent=1 // pred_check
      _
    $region31: #{tpu_custom_call.1} parent=1 // pred_check_branch
      %148 = sbr.rel (0) target = $region33
    $region32: #{tpu_custom_call.1} parent=1 // pred_region
      %149 = dma.done [#allocation5], 128
    $region33: #{tpu_custom_call.1} parent=1 // pred_fallthru
      _
    %150 = vsyncpa [#allocation4], 1
    %151 = vsyncpa [#allocation7], 1
    %152 = vsyncpa [#allocation5], 1

</llo_original>
